<compile_context>
chip_gen: v7x
topology: tpu7x:2x2x1
jax: 0.10.0
libtpu: 0.0.40
codegen_flags: <defaults>
</compile_context>

<pallas_src>
import jax
import jax.numpy as jnp
from jax.experimental import pallas as pl
from jax.experimental.pallas import tpu as pltpu


def _round_up(x, m):
    return ((x + m - 1) // m) * m


def value_net_kernel(x_ref, w1_ref, b1_ref, w2_ref, b2_ref, wv_ref, bv_ref, o_ref):
    """Batch-major forward for one batch tile.

    x_ref : (TB, D)    input dtype (f32); cast to compute dtype in-kernel
    w1_ref: (D, fc1)   compute dtype   (= W1^T)
    b1_ref: (1, fc1)   f32
    w2_ref: (fc2, fc2) compute dtype   (= (W2 @ W2)^T  -- folded double fc2)
    b2_ref: (1, fc2)   f32             (= W2 @ b2 + b2)
    wv_ref: (fc2, 1)   compute dtype   (= Wv^T)
    bv_ref: (1, 1)     f32 scalar in SMEM
    o_ref : (TB, 1)    f32
    """
    x = x_ref[...].astype(w1_ref.dtype)

    # fc1 + relu
    h = jnp.dot(x, w1_ref[...], preferred_element_type=jnp.float32) + b1_ref[...]
    h = jnp.maximum(h, 0.0)

    # fc2 applied twice (algebraically folded into one matmul), then relu
    h = jnp.dot(h.astype(w2_ref.dtype), w2_ref[...],
                preferred_element_type=jnp.float32) + b2_ref[...]
    h = jnp.maximum(h, 0.0)

    # value head -> (TB, 1)
    v = jnp.dot(h.astype(wv_ref.dtype), wv_ref[...],
                preferred_element_type=jnp.float32)
    o_ref[...] = v + bv_ref[0, 0]


def prepare_value_net_params(w1, b1, w2, b2, wv, bv, *, compute_dtype=jnp.bfloat16):
    """One-time parameter preparation (hoisted out of the per-call path).

    PyTorch nn.Linear layout in:
      w1: (fc1, D),  b1: (fc1,)
      w2: (fc2, fc1), b2: (fc2,)   (fc1 == fc2 required: fc2 is applied twice)
      wv: (1, fc2),  bv: (1,)
    """
    w1 = jnp.asarray(w1); b1 = jnp.asarray(b1)
    w2 = jnp.asarray(w2); b2 = jnp.asarray(b2)
    wv = jnp.asarray(wv); bv = jnp.asarray(bv)

    fc1 = w1.shape[0]
    fc2 = w2.shape[0]
    assert w2.shape == (fc2, fc1) and fc1 == fc2, "double fc2 needs fc1 == fc2"

    # fc2(fc2(h)) = h @ (W2 @ W2)^T + (W2 @ b2 + b2)
    w1t = w1.T.astype(compute_dtype)                                   # (D,  fc1)
    b1r = b1.reshape(1, fc1).astype(jnp.float32)                       # (1,  fc1)
    w2t_eff = (w2 @ w2).T.astype(compute_dtype)                        # (fc2, fc2)
    b2r_eff = (w2 @ b2 + b2).reshape(1, fc2).astype(jnp.float32)       # (1,  fc2)
    wvt = wv.reshape(1, fc2).T.astype(compute_dtype)                   # (fc2, 1)
    bvs = bv.reshape(1, 1).astype(jnp.float32)                         # (1,  1) -> SMEM
    return (w1t, b1r, w2t_eff, b2r_eff, wvt, bvs)


def value_network_forward_prepared(state, prepared, *, block_b=4096,
                                   single_tile_max=2048):
    """Forward with pre-prepared params.  state: (B, D) f32 -> (B, 1) f32."""
    w1t, b1r, w2t_eff, b2r_eff, wvt, bvs = prepared
    B, D = state.shape
    fc1 = w1t.shape[1]
    fc2 = w2t_eff.shape[0]
    assert w1t.shape[0] == D

    # --- batch tiling ------------------------------------------------------
    # Small batch: one full-batch tile (per-step overhead dominates any split).
    # Large batch: >=2 grid steps (v7x megacore), tile capped at block_b,
    # multiple of 256 sublanes for clean tiling / MXU alignment.
    if B <= single_tile_max:
        tb, b_pad = B, B
    else:
        tb = min(block_b, _round_up(pl.cdiv(B, 2), 256))
        b_pad = _round_up(B, tb)

    x = state
    if b_pad != B:
        # Only happens for large B not divisible by the tile; padded rows
        # produce garbage values that are sliced off below.
        x = jnp.pad(x, ((0, b_pad - B), (0, 0)))

    out = pl.pallas_call(
        value_net_kernel,
        out_shape=jax.ShapeDtypeStruct((b_pad, 1), jnp.float32),
        grid=(b_pad // tb,),
        in_specs=[
            pl.BlockSpec((tb, D), lambda i: (i, 0)),            # state tile
            pl.BlockSpec((D, fc1), lambda i: (0, 0)),           # W1^T (resident)
            pl.BlockSpec((1, fc1), lambda i: (0, 0)),           # b1
            pl.BlockSpec((fc2, fc2), lambda i: (0, 0)),         # (W2 @ W2)^T (resident)
            pl.BlockSpec((1, fc2), lambda i: (0, 0)),           # folded fc2 bias
            pl.BlockSpec((fc2, 1), lambda i: (0, 0)),           # value-head weight
            pl.BlockSpec(memory_space=pltpu.MemorySpace.SMEM),  # bv scalar
        ],
        out_specs=pl.BlockSpec((tb, 1), lambda i: (i, 0)),
        compiler_params=pltpu.CompilerParams(
            dimension_semantics=("parallel",),       # megacore on v7x
            vmem_limit_bytes=48 * 1024 * 1024,       # headroom for big tiles; < v7x 64 MiB
        ),
    )(x, w1t, b1r, w2t_eff, b2r_eff, wvt, bvs)

    if b_pad != B:
        out = out[:B]
    return out


def value_network_forward(state, w1, b1, w2, b2, wv, bv, *,
                          compute_dtype=jnp.bfloat16, **kwargs):
    """Convenience wrapper: prepare params then run (prefer preparing once)."""
    prepared = prepare_value_net_params(w1, b1, w2, b2, wv, bv,
                                        compute_dtype=compute_dtype)
    return value_network_forward_prepared(state, prepared, **kwargs)


def init_params(key, input_dim, fc1_dims, fc2_dims):
    """Deterministic synthetic parameters in PyTorch nn.Linear layout."""
    k1, k2, k3, k4, k5, k6 = jax.random.split(key, 6)
    w1 = jax.random.normal(k1, (fc1_dims, input_dim), jnp.float32) * 0.1
    b1 = jax.random.normal(k2, (fc1_dims,), jnp.float32) * 0.01
    w2 = jax.random.normal(k3, (fc2_dims, fc1_dims), jnp.float32) * 0.1
    b2 = jax.random.normal(k4, (fc2_dims,), jnp.float32) * 0.01
    wv = jax.random.normal(k5, (1, fc2_dims), jnp.float32) * 0.1
    bv = jax.random.normal(k6, (1,), jnp.float32) * 0.01
    return w1, b1, w2, b2, wv, bv


def _reference_forward(state, w1, b1, w2, b2, wv, bv):
    """Pure-JAX reference with the exact (un-folded) PyTorch forward semantics."""
    h = jnp.maximum(state @ w1.T + b1, 0.0)
    h = h @ w2.T + b2
    h = jnp.maximum(h @ w2.T + b2, 0.0)
    return (h @ wv.T + bv).reshape(state.shape[0], 1)


if __name__ == "__main__":
    key = jax.random.PRNGKey(0)
    k_x, k_p, k_x2 = jax.random.split(key, 3)

    batch, input_dim, fc1_dims, fc2_dims = 8, 8, 32, 32
    state = jax.random.normal(k_x, (batch, input_dim), jnp.float32)
    params = init_params(k_p, input_dim, fc1_dims, fc2_dims)
    w1, b1, w2, b2, wv, bv = params

    # Prepare params once (hoisted fold / transpose / cast), then run.
    prepared_f32 = prepare_value_net_params(*params, compute_dtype=jnp.float32)
    prepared_bf16 = prepare_value_net_params(*params, compute_dtype=jnp.bfloat16)

    v_f32 = value_network_forward_prepared(state, prepared_f32)
    v_bf16 = value_network_forward_prepared(state, prepared_bf16)
    jax.block_until_ready((v_f32, v_bf16))

    v_ref = _reference_forward(state, *params)
    assert v_f32.shape == (batch, 1) and v_bf16.shape == (batch, 1)
    assert jnp.allclose(v_f32, v_ref, atol=1e-4, rtol=1e-4)
    assert jnp.allclose(v_bf16, v_ref, atol=2e-2, rtol=2e-2)

    # Also exercise the multi-tile / padding path (still small shapes) by
    # forcing a 256-row tile over a 300-row batch -> grid of 2 steps + pad.
    batch2 = 300
    state2 = jax.random.normal(k_x2, (batch2, input_dim), jnp.float32)
    v2 = value_network_forward_prepared(state2, prepared_f32,
                                        block_b=256, single_tile_max=128)
    jax.block_until_ready(v2)
    v2_ref = _reference_forward(state2, *params)
    assert v2.shape == (batch2, 1)
    assert jnp.allclose(v2, v2_ref, atol=1e-4, rtol=1e-4)

    # TODO(synk): Adam optimizer / checkpoint save-load / device placement from
    # the PyTorch module are training & I/O concerns, not part of the forward.
    print("KERNEL_OK")
</pallas_src>

<mosaic_0001>
module attributes {stable_mosaic.version = 11 : i64} {
  func.func @value_net_kernel(%arg0: i32, %arg1: memref<8x8xf32, #tpu.memory_space<vmem>>, %arg2: memref<8x32xf32, #tpu.memory_space<vmem>>, %arg3: memref<1x32xf32, #tpu.memory_space<vmem>>, %arg4: memref<32x32xf32, #tpu.memory_space<vmem>>, %arg5: memref<1x32xf32, #tpu.memory_space<vmem>>, %arg6: memref<32x1xf32, #tpu.memory_space<vmem>>, %arg7: memref<1x1xf32, #tpu.memory_space<smem>>, %arg8: memref<8x1xf32, #tpu.memory_space<vmem>>) attributes {dimension_semantics = [#tpu.dimension_semantics<parallel>], iteration_bounds = array<i64: 1>, scalar_prefetch = 0 : i64, scratch_operands = 0 : i64, tpu.core_type = #tpu.core_type<tc>, window_params = [{transform_indices = @transform_0, window_bounds = array<i64: 8, 8>}, {pipeline_mode = #tpu.pipeline_mode<synchronous>, transform_indices = @transform_1, window_bounds = array<i64: 8, 32>}, {pipeline_mode = #tpu.pipeline_mode<synchronous>, transform_indices = @transform_2, window_bounds = array<i64: 1, 32>}, {pipeline_mode = #tpu.pipeline_mode<synchronous>, transform_indices = @transform_3, window_bounds = array<i64: 32, 32>}, {pipeline_mode = #tpu.pipeline_mode<synchronous>, transform_indices = @transform_4, window_bounds = array<i64: 1, 32>}, {pipeline_mode = #tpu.pipeline_mode<synchronous>, transform_indices = @transform_5, window_bounds = array<i64: 32, 1>}, {transform_indices = @transform_6, window_bounds = array<i64: 1, 1>}, {transform_indices = @transform_7, window_bounds = array<i64: 8, 1>}]} {
    %c0 = arith.constant 0 : index
    %c0_0 = arith.constant 0 : index
    %0 = vector.load %arg1[%c0, %c0_0] : memref<8x8xf32, #tpu.memory_space<vmem>>, vector<8x8xf32>
    %c0_1 = arith.constant 0 : index
    %c0_2 = arith.constant 0 : index
    %1 = vector.load %arg2[%c0_1, %c0_2] : memref<8x32xf32, #tpu.memory_space<vmem>>, vector<8x32xf32>
    %cst = arith.constant dense<0.000000e+00> : vector<8x32xf32>
    %2 = tpu.matmul %0, %1, %cst {dimension_numbers = #tpu.dot_dimension_numbers<[1], [0], [0], [1], [0, 0, 1, 1], [], []>} : vector<8x8xf32>, vector<8x32xf32>, vector<8x32xf32> -> vector<8x32xf32>
    %c0_3 = arith.constant 0 : index
    %c0_4 = arith.constant 0 : index
    %3 = vector.load %arg3[%c0_3, %c0_4] : memref<1x32xf32, #tpu.memory_space<vmem>>, vector<1x32xf32>
    %4 = vector.broadcast %3 : vector<1x32xf32> to vector<8x32xf32>
    %5 = arith.addf %2, %4 : vector<8x32xf32>
    %cst_5 = arith.constant 0.000000e+00 : f32
    %6 = vector.broadcast %cst_5 : f32 to vector<8x32xf32>
    %7 = arith.maximumf %5, %6 : vector<8x32xf32>
    %c0_6 = arith.constant 0 : index
    %c0_7 = arith.constant 0 : index
    %8 = vector.load %arg4[%c0_6, %c0_7] : memref<32x32xf32, #tpu.memory_space<vmem>>, vector<32x32xf32>
    %cst_8 = arith.constant dense<0.000000e+00> : vector<8x32xf32>
    %9 = tpu.matmul %7, %8, %cst_8 {dimension_numbers = #tpu.dot_dimension_numbers<[1], [0], [0], [1], [0, 0, 1, 1], [], []>} : vector<8x32xf32>, vector<32x32xf32>, vector<8x32xf32> -> vector<8x32xf32>
    %c0_9 = arith.constant 0 : index
    %c0_10 = arith.constant 0 : index
    %10 = vector.load %arg5[%c0_9, %c0_10] : memref<1x32xf32, #tpu.memory_space<vmem>>, vector<1x32xf32>
    %11 = vector.broadcast %10 : vector<1x32xf32> to vector<8x32xf32>
    %12 = arith.addf %9, %11 : vector<8x32xf32>
    %cst_11 = arith.constant 0.000000e+00 : f32
    %13 = vector.broadcast %cst_11 : f32 to vector<8x32xf32>
    %14 = arith.maximumf %12, %13 : vector<8x32xf32>
    %c0_12 = arith.constant 0 : index
    %c0_13 = arith.constant 0 : index
    %15 = vector.load %arg6[%c0_12, %c0_13] : memref<32x1xf32, #tpu.memory_space<vmem>>, vector<32x1xf32>
    %cst_14 = arith.constant dense<0.000000e+00> : vector<8x1xf32>
    %16 = tpu.matmul %14, %15, %cst_14 {dimension_numbers = #tpu.dot_dimension_numbers<[1], [0], [0], [1], [0, 0, 1, 1], [], []>} : vector<8x32xf32>, vector<32x1xf32>, vector<8x1xf32> -> vector<8x1xf32>
    %c0_15 = arith.constant 0 : index
    %c0_16 = arith.constant 0 : index
    %17 = memref.load %arg7[%c0_15, %c0_16] : memref<1x1xf32, #tpu.memory_space<smem>>
    %18 = vector.broadcast %17 : f32 to vector<8x1xf32>
    %19 = arith.addf %16, %18 : vector<8x1xf32>
    %c0_17 = arith.constant 0 : index
    %c0_18 = arith.constant 0 : index
    %20 = vector.load %arg8[%c0_17, %c0_18] : memref<8x1xf32, #tpu.memory_space<vmem>>, vector<8x1xf32>
    tpu.vector_store %arg8[%c0_17, %c0_18], %19 {strides = array<i32>} : memref<8x1xf32, #tpu.memory_space<vmem>>, vector<8x1xf32>,
    return
  }
  func.func @transform_0(%arg0: i32) -> (i32, i32) {
    %c0_i32 = arith.constant 0 : i32
    %c0_i32_0 = arith.constant 0 : i32
    return %arg0, %c0_i32 : i32, i32
  }
  func.func @transform_1(%arg0: i32) -> (i32, i32) {
    %c0_i32 = arith.constant 0 : i32
    %c0_i32_0 = arith.constant 0 : i32
    %c0_i32_1 = arith.constant 0 : i32
    return %c0_i32, %c0_i32_0 : i32, i32
  }
  func.func @transform_2(%arg0: i32) -> (i32, i32) {
    %c0_i32 = arith.constant 0 : i32
    %c0_i32_0 = arith.constant 0 : i32
    %c0_i32_1 = arith.constant 0 : i32
    return %c0_i32, %c0_i32_0 : i32, i32
  }
  func.func @transform_3(%arg0: i32) -> (i32, i32) {
    %c0_i32 = arith.constant 0 : i32
    %c0_i32_0 = arith.constant 0 : i32
    %c0_i32_1 = arith.constant 0 : i32
    return %c0_i32, %c0_i32_0 : i32, i32
  }
  func.func @transform_4(%arg0: i32) -> (i32, i32) {
    %c0_i32 = arith.constant 0 : i32
    %c0_i32_0 = arith.constant 0 : i32
    %c0_i32_1 = arith.constant 0 : i32
    return %c0_i32, %c0_i32_0 : i32, i32
  }
  func.func @transform_5(%arg0: i32) -> (i32, i32) {
    %c0_i32 = arith.constant 0 : i32
    %c0_i32_0 = arith.constant 0 : i32
    %c0_i32_1 = arith.constant 0 : i32
    return %c0_i32, %c0_i32_0 : i32, i32
  }
  func.func @transform_6(%arg0: i32) -> (i32, i32) {
    %c0_i32 = arith.constant 0 : i32
    %c0_i32_0 = arith.constant 0 : i32
    %c0_i32_1 = arith.constant 0 : i32
    return %c0_i32, %c0_i32_0 : i32, i32
  }
  func.func @transform_7(%arg0: i32) -> (i32, i32) {
    %c0_i32 = arith.constant 0 : i32
    %c0_i32_0 = arith.constant 0 : i32
    return %arg0, %c0_i32 : i32, i32
  }
}

</mosaic_0001>

<llo_original>
// kernel: tpu_custom_call.1
$region0: #{tpu_custom_call.1}
  #allocation0 [shape = 'u32[]', space=smem, size = 0x4, offset = 0x4, fixed_abs, tag = 'smem constant byte address 0x4 - core index']
  #allocation1 [shape = 'u32[144,128]{1,0:T(1,128)}', space=vmem, size = 0x12000, scoped, tag = 'internal scratch']
  #allocation2 [shape = 'f32[1,1]{1,0:T(1,128)S(6)}', space=smem, size = 0x200, scoped, tag = 'scoped memory for tpu_custom_call.1']
  %s0 = inlined_call_operand.vmem [shape: f32[8,8], index: 0, kind: input, shape index: {}]
  %s1 = inlined_call_operand.vmem [shape: f32[8,32], index: 1, kind: input, shape index: {}]
  %s2 = inlined_call_operand.hbm [shape: f32[1,32], index: 2, kind: input, shape index: {}]
  %s3 = inlined_call_operand.vmem [shape: f32[32,32], index: 3, kind: input, shape index: {}]
  %s4 = inlined_call_operand.vmem [shape: f32[1,32], index: 4, kind: input, shape index: {}]
  %s5 = inlined_call_operand.vmem [shape: f32[32,1], index: 5, kind: input, shape index: {}]
  %s6 = inlined_call_operand.<no memory space> [shape: f32[1,1], index: 6, kind: input, shape index: {}]
  %s7 = inlined_call_operand.vmem [shape: f32[8,1], index: 7, kind: output, shape index: {}]
  %s8 = sld [smem:[#allocation0]]
  $region42: #{tpu_custom_call.1} parent=0
    _
  %s10 = ssub.s32 1, %s8
  %s11 = scalar_select 0, %s10, %s8
  %12 = sst [smem:[#allocation2]] %s6
  $region1: #{tpu_custom_call.1} parent=0
    #allocation3 [shape = 'u8[512]{0}', space=vmem, size = 0x400, scoped, tag = 'input window, operand 2, single buffered']
    #allocation4 [shape = 's32[1]{0}', space=sflag, size = 0x4, scoped, tag = 'scoped memory for tpu_custom_call.1']
    %13 = vsyncpa [#allocation4], 0
    // Predicated region
    $region2: #{tpu_custom_call.1} parent=1 // pred_check
      _
    $region3: #{tpu_custom_call.1} parent=1 // pred_check_branch
      %15 = sbr.rel (0) target = $region5
    $region4: #{tpu_custom_call.1} parent=1 // pred_region
      _
    $region5: #{tpu_custom_call.1} parent=1 // pred_fallthru
      _
    // Predicated region
    $region6: #{tpu_custom_call.1} parent=1 // pred_check
      _
    $region7: #{tpu_custom_call.1} parent=1 // pred_check_branch
      %17 = sbr.rel (0) target = $region9
    $region8: #{tpu_custom_call.1} parent=1 // pred_region
      _
    $region9: #{tpu_custom_call.1} parent=1 // pred_fallthru
      _
    // Predicated region
    $region10: #{tpu_custom_call.1} parent=1 // pred_check
      _
    $region11: #{tpu_custom_call.1} parent=1 // pred_check_branch
      %19 = sbr.rel (0) target = $region13
    $region12: #{tpu_custom_call.1} parent=1 // pred_region
      %s21 = ssub.s32 16, 16
      %22 = vsyncadd [#allocation4], %s21
      %s24 = sshll.u32 [#allocation3], 4
      %s25 = int_to_ptr.vmem [resolvable:$true] %s24
      %27 = dma.hbm_to_vmem [thread:$0]  %s2, 16, %s25, [#allocation4]
    $region13: #{tpu_custom_call.1} parent=1 // pred_fallthru
      _
    // Predicated region
    $region14: #{tpu_custom_call.1} parent=1 // pred_check
      _
    $region15: #{tpu_custom_call.1} parent=1 // pred_check_branch
      %29 = sbr.rel (0) target = $region17
    $region16: #{tpu_custom_call.1} parent=1 // pred_region
      _
    $region17: #{tpu_custom_call.1} parent=1 // pred_fallthru
      _
    // Predicated region
    $region18: #{tpu_custom_call.1} parent=1 // pred_check
      _
    $region19: #{tpu_custom_call.1} parent=1 // pred_check_branch
      %31 = sbr.rel (0) target = $region21
    $region20: #{tpu_custom_call.1} parent=1 // pred_region
      _
    $region21: #{tpu_custom_call.1} parent=1 // pred_fallthru
      _
    // Predicated region
    $region22: #{tpu_custom_call.1} parent=1 // pred_check
      _
    $region23: #{tpu_custom_call.1} parent=1 // pred_check_branch
      %33 = sbr.rel (0) target = $region25
    $region24: #{tpu_custom_call.1} parent=1 // pred_region
      _
    $region25: #{tpu_custom_call.1} parent=1 // pred_fallthru
      _
    // Predicated region
    $region26: #{tpu_custom_call.1} parent=1 // pred_check
      _
    $region27: #{tpu_custom_call.1} parent=1 // pred_check_branch
      %35 = sbr.rel (0) target = $region29
    $region28: #{tpu_custom_call.1} parent=1 // pred_region
      _
    $region29: #{tpu_custom_call.1} parent=1 // pred_fallthru
      _
    // Predicated region
    $region30: #{tpu_custom_call.1} parent=1 // pred_check
      _
    $region31: #{tpu_custom_call.1} parent=1 // pred_check_branch
      %37 = sbr.rel (0) target = $region33
    $region32: #{tpu_custom_call.1} parent=1 // pred_region
      %38 = dma.done [#allocation4], 16
    $region33: #{tpu_custom_call.1} parent=1 // pred_fallthru
      _
    %v39 = vld [vmem:[%s0] sm:$0xff]
    %v40 = vld [vmem:[%s1] sm:$0xff]
    %v41 = vld [vmem:[#allocation3] sm:$0x1]
    %v43 = vlaneseq
    %v44 = vshrl.u32 %v43, 7
    %v45 = vsub.s32 0, %v44
    %v46 = vrot.slane %v41, %v45
    %vm48 = vcmask 64512
    %v50 = vsel %vm48, %v39, 0
    %52 = vmatprep.subr.mxu0 0.0
    %53 = vmatpush1.msra.mxu0 %v40
    %54 = vmatprep.subr.mxu0 0.0
    %55 = vmatpush1.msra.mxu0 0.0
    %56 = vmatprep.subr.mxu0 0.0
    %57 = vmatpush1.msra.mxu0 0.0
    %58 = vmatprep.subr.mxu0 0.0
    %59 = vmatpush1.msra.mxu0 0.0
    %60 = vmatprep.subr.mxu0 0.0
    %61 = vmatpush1.msra.mxu0 0.0
    %62 = vmatprep.subr.mxu0 0.0
    %63 = vmatpush1.msra.mxu0 0.0
    %64 = vmatprep.subr.mxu0 0.0
    %65 = vmatpush1.msra.mxu0 0.0
    %66 = vmatprep.subr.mxu0 0.0
    %67 = vmatpush1.msra.mxu0 0.0
    %68 = vmatprep.subr.mxu0 0.0
    %69 = vmatpush1.msra.mxu0 0.0
    %70 = vmatprep.subr.mxu0 0.0
    %71 = vmatpush1.msra.mxu0 0.0
    %72 = vmatprep.subr.mxu0 0.0
    %73 = vmatpush1.msra.mxu0 0.0
    %74 = vmatprep.subr.mxu0 0.0
    %75 = vmatpush1.msra.mxu0 0.0
    %76 = vmatprep.subr.mxu0 0.0
    %77 = vmatpush1.msra.mxu0 0.0
    %78 = vmatprep.subr.mxu0 0.0
    %79 = vmatpush1.msra.mxu0 0.0
    %80 = vmatprep.subr.mxu0 0.0
    %81 = vmatpush1.msra.mxu0 0.0
    %82 = vmatprep.subr.mxu0 0.0
    %83 = vmatpush1.msra.mxu0 0.0
    %84 = vmatprep.subr.mxu0 0.0
    %85 = vmatpush1.msra.mxu0 0.0
    %86 = vmatprep.subr.mxu0 0.0
    %87 = vmatpush1.msra.mxu0 0.0
    %88 = vmatprep.subr.mxu0 0.0
    %89 = vmatpush1.msra.mxu0 0.0
    %90 = vmatprep.subr.mxu0 0.0
    %91 = vmatpush1.msra.mxu0 0.0
    %92 = vmatprep.subr.mxu0 0.0
    %93 = vmatpush1.msra.mxu0 0.0
    %94 = vmatprep.subr.mxu0 0.0
    %95 = vmatpush1.msra.mxu0 0.0
    %96 = vmatprep.subr.mxu0 0.0
    %97 = vmatpush1.msra.mxu0 0.0
    %98 = vmatprep.subr.mxu0 0.0
    %99 = vmatpush1.msra.mxu0 0.0
    %100 = vmatprep.subr.mxu0 0.0
    %101 = vmatpush1.msra.mxu0 0.0
    %102 = vmatprep.subr.mxu0 0.0
    %103 = vmatpush1.msra.mxu0 0.0
    %104 = vmatprep.subr.mxu0 0.0
    %105 = vmatpush1.msra.mxu0 0.0
    %106 = vmatprep.subr.mxu0 0.0
    %107 = vmatpush1.msra.mxu0 0.0
    %108 = vmatprep.subr.mxu0 0.0
    %109 = vmatpush1.msra.mxu0 0.0
    %110 = vmatprep.subr.mxu0 0.0
    %111 = vmatpush1.msra.mxu0 0.0
    %112 = vmatprep.subr.mxu0 0.0
    %113 = vmatpush1.msra.mxu0 0.0
    %114 = vmatprep.subr.mxu0 0.0
    %115 = vmatpush1.msra.mxu0 0.0
    %116 = vmatprep.mubr.f32.mxu0 0.0
    %117 = vmatmul.mubr.f32.gmra.mrb[0].mxu0 %v50
    %v118 = vpop.f32.mrb[0].mxu0
    %v119 = vadd.f32 %v46, %v118
    %v120 = vpop.f32.mrb[0].mxu0
    %121 = vdwg.mxu0
    %v122 = vmax.f32 %v119, 0.0
    %v123 = vld [vmem:[%s3] sm:$0xff]
    %v124 = vld [vmem:[%s3 + $0x8] sm:$0xff]
    %v125 = vld [vmem:[%s3 + $0x10] sm:$0xff]
    %v126 = vld [vmem:[%s3 + $0x18] sm:$0xff]
    %v127 = vld [vmem:[%s4] sm:$0x1]
    %v129 = vlaneseq
    %v130 = vshrl.u32 %v129, 7
    %v131 = vsub.s32 0, %v130
    %v132 = vrot.slane %v127, %v131
    %vm134 = vcmask 261120
    %v136 = vsel %vm134, %v122, 0
    %138 = vmatprep.subr.mxu0 0.0
    %139 = vmatpush1.msra.mxu0 %v123
    %140 = vmatprep.subr.mxu0 0.0
    %141 = vmatpush1.msra.mxu0 %v124
    %142 = vmatprep.subr.mxu0 0.0
    %143 = vmatpush1.msra.mxu0 %v125
    %144 = vmatprep.subr.mxu0 0.0
    %145 = vmatpush1.msra.mxu0 %v126
    %146 = vmatprep.subr.mxu0 0.0
    %147 = vmatpush1.msra.mxu0 0.0
    %148 = vmatprep.subr.mxu0 0.0
    %149 = vmatpush1.msra.mxu0 0.0
    %150 = vmatprep.subr.mxu0 0.0
    %151 = vmatpush1.msra.mxu0 0.0
    %152 = vmatprep.subr.mxu0 0.0
    %153 = vmatpush1.msra.mxu0 0.0
    %154 = vmatprep.subr.mxu0 0.0
    %155 = vmatpush1.msra.mxu0 0.0
    %156 = vmatprep.subr.mxu0 0.0
    %157 = vmatpush1.msra.mxu0 0.0
    %158 = vmatprep.subr.mxu0 0.0
    %159 = vmatpush1.msra.mxu0 0.0
    %160 = vmatprep.subr.mxu0 0.0
    %161 = vmatpush1.msra.mxu0 0.0
    %162 = vmatprep.subr.mxu0 0.0
    %163 = vmatpush1.msra.mxu0 0.0
    %164 = vmatprep.subr.mxu0 0.0
    %165 = vmatpush1.msra.mxu0 0.0
    %166 = vmatprep.subr.mxu0 0.0
    %167 = vmatpush1.msra.mxu0 0.0
    %168 = vmatprep.subr.mxu0 0.0
    %169 = vmatpush1.msra.mxu0 0.0
    %170 = vmatprep.subr.mxu0 0.0
    %171 = vmatpush1.msra.mxu0 0.0
    %172 = vmatprep.subr.mxu0 0.0
    %173 = vmatpush1.msra.mxu0 0.0
    %174 = vmatprep.subr.mxu0 0.0
    %175 = vmatpush1.msra.mxu0 0.0
    %176 = vmatprep.subr.mxu0 0.0
    %177 = vmatpush1.msra.mxu0 0.0
    %178 = vmatprep.subr.mxu0 0.0
    %179 = vmatpush1.msra.mxu0 0.0
    %180 = vmatprep.subr.mxu0 0.0
    %181 = vmatpush1.msra.mxu0 0.0
    %182 = vmatprep.subr.mxu0 0.0
    %183 = vmatpush1.msra.mxu0 0.0
    %184 = vmatprep.subr.mxu0 0.0
    %185 = vmatpush1.msra.mxu0 0.0
    %186 = vmatprep.subr.mxu0 0.0
    %187 = vmatpush1.msra.mxu0 0.0
    %188 = vmatprep.subr.mxu0 0.0
    %189 = vmatpush1.msra.mxu0 0.0
    %190 = vmatprep.subr.mxu0 0.0
    %191 = vmatpush1.msra.mxu0 0.0
    %192 = vmatprep.subr.mxu0 0.0
    %193 = vmatpush1.msra.mxu0 0.0
    %194 = vmatprep.subr.mxu0 0.0
    %195 = vmatpush1.msra.mxu0 0.0
    %196 = vmatprep.subr.mxu0 0.0
    %197 = vmatpush1.msra.mxu0 0.0
    %198 = vmatprep.subr.mxu0 0.0
    %199 = vmatpush1.msra.mxu0 0.0
    %200 = vmatprep.subr.mxu0 0.0
    %201 = vmatpush1.msra.mxu0 0.0
    %202 = vmatprep.mubr.f32.mxu0 0.0
    %203 = vmatmul.mubr.f32.gmra.mrb[0].mxu0 %v136
    %v204 = vpop.f32.mrb[0].mxu0
    %v205 = vadd.f32 %v132, %v204
    %v206 = vpop.f32.mrb[0].mxu0
    %207 = vdwg.mxu0
    %v208 = vmax.f32 %v205, 0.0
    %v209 = vld [vmem:[%s5] sm:$0xff]
    %v210 = vld [vmem:[%s5 + $0x8] sm:$0xff]
    %v211 = vld [vmem:[%s5 + $0x10] sm:$0xff]
    %v212 = vld [vmem:[%s5 + $0x18] sm:$0xff]
    %s213 = sld [smem:[#allocation2]]
    %v214 = vstv %s213
    %v216 = vsel %vm134, %v208, 0
    %218 = vmatprep.subr.mxu0 0.0
    %219 = vmatpush1.msra.mxu0 %v209
    %220 = vmatprep.subr.mxu0 0.0
    %221 = vmatpush1.msra.mxu0 %v210
    %222 = vmatprep.subr.mxu0 0.0
    %223 = vmatpush1.msra.mxu0 %v211
    %224 = vmatprep.subr.mxu0 0.0
    %225 = vmatpush1.msra.mxu0 %v212
    %226 = vmatprep.subr.mxu0 0.0
    %227 = vmatpush1.msra.mxu0 0.0
    %228 = vmatprep.subr.mxu0 0.0
    %229 = vmatpush1.msra.mxu0 0.0
    %230 = vmatprep.subr.mxu0 0.0
    %231 = vmatpush1.msra.mxu0 0.0
    %232 = vmatprep.subr.mxu0 0.0
    %233 = vmatpush1.msra.mxu0 0.0
    %234 = vmatprep.subr.mxu0 0.0
    %235 = vmatpush1.msra.mxu0 0.0
    %236 = vmatprep.subr.mxu0 0.0
    %237 = vmatpush1.msra.mxu0 0.0
    %238 = vmatprep.subr.mxu0 0.0
    %239 = vmatpush1.msra.mxu0 0.0
    %240 = vmatprep.subr.mxu0 0.0
    %241 = vmatpush1.msra.mxu0 0.0
    %242 = vmatprep.subr.mxu0 0.0
    %243 = vmatpush1.msra.mxu0 0.0
    %244 = vmatprep.subr.mxu0 0.0
    %245 = vmatpush1.msra.mxu0 0.0
    %246 = vmatprep.subr.mxu0 0.0
    %247 = vmatpush1.msra.mxu0 0.0
    %248 = vmatprep.subr.mxu0 0.0
    %249 = vmatpush1.msra.mxu0 0.0
    %250 = vmatprep.subr.mxu0 0.0
    %251 = vmatpush1.msra.mxu0 0.0
    %252 = vmatprep.subr.mxu0 0.0
    %253 = vmatpush1.msra.mxu0 0.0
    %254 = vmatprep.subr.mxu0 0.0
    %255 = vmatpush1.msra.mxu0 0.0
    %256 = vmatprep.subr.mxu0 0.0
    %257 = vmatpush1.msra.mxu0 0.0
    %258 = vmatprep.subr.mxu0 0.0
    %259 = vmatpush1.msra.mxu0 0.0
    %260 = vmatprep.subr.mxu0 0.0
    %261 = vmatpush1.msra.mxu0 0.0
    %262 = vmatprep.subr.mxu0 0.0
    %263 = vmatpush1.msra.mxu0 0.0
    %264 = vmatprep.subr.mxu0 0.0
    %265 = vmatpush1.msra.mxu0 0.0
    %266 = vmatprep.subr.mxu0 0.0
    %267 = vmatpush1.msra.mxu0 0.0
    %268 = vmatprep.subr.mxu0 0.0
    %269 = vmatpush1.msra.mxu0 0.0
    %270 = vmatprep.subr.mxu0 0.0
    %271 = vmatpush1.msra.mxu0 0.0
    %272 = vmatprep.subr.mxu0 0.0
    %273 = vmatpush1.msra.mxu0 0.0
    %274 = vmatprep.subr.mxu0 0.0
    %275 = vmatpush1.msra.mxu0 0.0
    %276 = vmatprep.subr.mxu0 0.0
    %277 = vmatpush1.msra.mxu0 0.0
    %278 = vmatprep.subr.mxu0 0.0
    %279 = vmatpush1.msra.mxu0 0.0
    %280 = vmatprep.subr.mxu0 0.0
    %281 = vmatpush1.msra.mxu0 0.0
    %282 = vmatprep.mubr.f32.mxu0 0.0
    %283 = vmatmul.mubr.f32.gmra.mrb[0].mxu0 %v216
    %v284 = vpop.f32.mrb[0].mxu0
    %v285 = vadd.f32 %v214, %v284
    %v286 = vpop.f32.mrb[0].mxu0
    %287 = vdwg.mxu0
    %vm288 = vcmask 7168
    %289 = vst.msk [vmem:[%s7] sm:$0xff] %vm288, %v285
    // Predicated region
    $region34: #{tpu_custom_call.1} parent=1 // pred_check
      _
    $region35: #{tpu_custom_call.1} parent=1 // pred_check_branch
      %291 = sbr.rel (0) target = $region37
    $region36: #{tpu_custom_call.1} parent=1 // pred_region
      _
    $region37: #{tpu_custom_call.1} parent=1 // pred_fallthru
      _
    // Predicated region
    $region38: #{tpu_custom_call.1} parent=1 // pred_check
      _
    $region39: #{tpu_custom_call.1} parent=1 // pred_check_branch
      %293 = sbr.rel (0) target = $region41
    $region40: #{tpu_custom_call.1} parent=1 // pred_region
      _
    $region41: #{tpu_custom_call.1} parent=1 // pred_fallthru
      _
    %294 = vsyncpa [#allocation4], 1

</llo_original>
